<compile_context>
chip_gen: v7x
topology: tpu7x:2x2x1
jax: 0.10.0
libtpu: 0.0.40
codegen_flags: <defaults>
</compile_context>

<pallas_src>
import functools

import jax
import jax.numpy as jnp
from jax.experimental import pallas as pl
from jax.experimental.pallas import tpu as pltpu

LN_EPS = 1e-5
LANE = 128
SUBLANE = 8


def _round_up(n, m):
    return (n + m - 1) // m * m


def mlp_kernel(x_ref, w1_ref, b1_ref, g_ref, beta_ref, w2_ref, b2_ref, o_ref,
               *, hidden_dim):
    # layer1: (TM, Fin_p) @ (Fin_p, H_p) + (1, H_p); padded columns are exactly 0
    x = x_ref[...]
    h = jnp.dot(x, w1_ref[...], preferred_element_type=jnp.float32) + b1_ref[...]

    # Hardswish: x * relu6(x + 3) / 6   (hardswish(0) == 0, so padding stays 0)
    h = h * jnp.clip(h + 3.0, 0.0, 6.0) * (1.0 / 6.0)

    # LayerNorm over the real hidden width (padded columns are identically zero,
    # so sums over the padded axis equal sums over the real axis; the variance is
    # computed with an explicit column mask to match the centered reference exactly).
    inv_h = 1.0 / hidden_dim
    mean = jnp.sum(h, axis=-1, keepdims=True) * inv_h
    col = jax.lax.broadcasted_iota(jnp.int32, h.shape, 1)
    cent = jnp.where(col < hidden_dim, h - mean, 0.0)
    var = jnp.sum(cent * cent, axis=-1, keepdims=True) * inv_h
    hn = (h - mean) * jax.lax.rsqrt(var + LN_EPS)
    # gamma/beta are zero-padded -> padded columns of hn become exactly 0 again.
    hn = hn * g_ref[...] + beta_ref[...]

    # layer2: (TM, H_p) @ (H_p, Fout_p) + (1, Fout_p)
    out = jnp.dot(hn, w2_ref[...], preferred_element_type=jnp.float32) + b2_ref[...]
    o_ref[...] = out.astype(o_ref.dtype)


@functools.partial(jax.jit, static_argnames=("block_m",))
def linear_mlp(x, w1, b1, gamma, beta, w2, b2, *, block_m=256):
    """x: (B, in_features); w1: (in, hidden); w2: (hidden, out) (transposed vs torch)."""
    B, f_in = x.shape
    hidden = w1.shape[1]
    f_out = w2.shape[1]

    # Lane-dense (multiple-of-128) padded feature dims.
    f_in_p = _round_up(f_in, LANE)
    h_p = _round_up(hidden, LANE)
    f_out_p = _round_up(f_out, LANE)

    # Batch tile: multiple of 8 sublanes, capped at block_m; pad batch to a tile multiple.
    tm = min(block_m, _round_up(B, SUBLANE))
    tm = _round_up(tm, SUBLANE)
    b_p = _round_up(B, tm)

    # Zero-pad everything once (padding is exact: see kernel comments).
    xp  = jnp.zeros((b_p, f_in_p), x.dtype).at[:B, :f_in].set(x)
    w1p = jnp.zeros((f_in_p, h_p), w1.dtype).at[:f_in, :hidden].set(w1)
    b1p = jnp.zeros((1, h_p), b1.dtype).at[0, :hidden].set(b1)
    gp  = jnp.zeros((1, h_p), gamma.dtype).at[0, :hidden].set(gamma)
    btp = jnp.zeros((1, h_p), beta.dtype).at[0, :hidden].set(beta)
    w2p = jnp.zeros((h_p, f_out_p), w2.dtype).at[:hidden, :f_out].set(w2)
    b2p = jnp.zeros((1, f_out_p), b2.dtype).at[0, :f_out].set(b2)

    grid = (b_p // tm,)
    kernel = functools.partial(mlp_kernel, hidden_dim=hidden)

    out_p = pl.pallas_call(
        kernel,
        out_shape=jax.ShapeDtypeStruct((b_p, f_out_p), x.dtype),
        grid_spec=pltpu.PrefetchScalarGridSpec(
            num_scalar_prefetch=0,
            grid=grid,
            in_specs=[
                # activations stream over the batch grid
                pl.BlockSpec((tm, f_in_p), lambda i: (i, 0)),
                # weights / biases / LN params: constant index_map -> fetched once, stay resident
                pl.BlockSpec((f_in_p, h_p), lambda i: (0, 0)),
                pl.BlockSpec((1, h_p), lambda i: (0, 0)),
                pl.BlockSpec((1, h_p), lambda i: (0, 0)),
                pl.BlockSpec((1, h_p), lambda i: (0, 0)),
                pl.BlockSpec((h_p, f_out_p), lambda i: (0, 0)),
                pl.BlockSpec((1, f_out_p), lambda i: (0, 0)),
            ],
            out_specs=pl.BlockSpec((tm, f_out_p), lambda i: (i, 0)),
        ),
        compiler_params=pltpu.CompilerParams(
            dimension_semantics=("parallel",),
        ),
    )(xp, w1p, b1p, gp, btp, w2p, b2p)

    return out_p[:B, :f_out]


def reference(x, w1, b1, gamma, beta, w2, b2):
    h = x @ w1 + b1
    h = h * jnp.clip(h + 3.0, 0.0, 6.0) / 6.0
    mean = jnp.mean(h, axis=-1, keepdims=True)
    var = jnp.mean((h - mean) ** 2, axis=-1, keepdims=True)
    hn = (h - mean) * jax.lax.rsqrt(var + LN_EPS)
    hn = hn * gamma + beta
    return hn @ w2 + b2


if __name__ == "__main__":
    batch, in_features, hidden_dim, out_features = 64, 32, 64, 16

    key = jax.random.PRNGKey(0)
    kx, kw1, kb1, kg, kbt, kw2, kb2 = jax.random.split(key, 7)

    x = jax.random.normal(kx, (batch, in_features), dtype=jnp.float32)
    # Deterministic synthetic parameters (PyTorch shapes, weights stored transposed).
    w1 = jax.random.normal(kw1, (in_features, hidden_dim), dtype=jnp.float32) * 0.1
    b1 = jax.random.normal(kb1, (hidden_dim,), dtype=jnp.float32) * 0.1
    gamma = 1.0 + 0.1 * jax.random.normal(kg, (hidden_dim,), dtype=jnp.float32)
    beta = 0.1 * jax.random.normal(kbt, (hidden_dim,), dtype=jnp.float32)
    w2 = jax.random.normal(kw2, (hidden_dim, out_features), dtype=jnp.float32) * 0.1
    b2 = jax.random.normal(kb2, (out_features,), dtype=jnp.float32) * 0.1

    # block_m=32 -> 2 grid steps at batch=64, exercising the batch-tiling path.
    out = linear_mlp(x, w1, b1, gamma, beta, w2, b2, block_m=32)
    jax.block_until_ready(out)

    ref = reference(x, w1, b1, gamma, beta, w2, b2)
    assert out.shape == (batch, out_features)
    assert jnp.allclose(out, ref, atol=1e-4, rtol=1e-4), "mismatch vs reference"

    print("KERNEL_OK")
</pallas_src>

<mosaic_0001>
module attributes {stable_mosaic.version = 11 : i64} {
  func.func @mlp_kernel(%arg0: i32, %arg1: memref<32x128xf32, #tpu.memory_space<vmem>>, %arg2: memref<128x128xf32, #tpu.memory_space<vmem>>, %arg3: memref<1x128xf32, #tpu.memory_space<vmem>>, %arg4: memref<1x128xf32, #tpu.memory_space<vmem>>, %arg5: memref<1x128xf32, #tpu.memory_space<vmem>>, %arg6: memref<128x128xf32, #tpu.memory_space<vmem>>, %arg7: memref<1x128xf32, #tpu.memory_space<vmem>>, %arg8: memref<32x128xf32, #tpu.memory_space<vmem>>) attributes {dimension_semantics = [#tpu.dimension_semantics<parallel>], iteration_bounds = array<i64: 2>, scalar_prefetch = 0 : i64, scratch_operands = 0 : i64, tpu.core_type = #tpu.core_type<tc>, window_params = [{transform_indices = @transform_0, window_bounds = array<i64: 32, 128>}, {pipeline_mode = #tpu.pipeline_mode<synchronous>, transform_indices = @transform_1, window_bounds = array<i64: 128, 128>}, {pipeline_mode = #tpu.pipeline_mode<synchronous>, transform_indices = @transform_2, window_bounds = array<i64: 1, 128>}, {pipeline_mode = #tpu.pipeline_mode<synchronous>, transform_indices = @transform_3, window_bounds = array<i64: 1, 128>}, {pipeline_mode = #tpu.pipeline_mode<synchronous>, transform_indices = @transform_4, window_bounds = array<i64: 1, 128>}, {pipeline_mode = #tpu.pipeline_mode<synchronous>, transform_indices = @transform_5, window_bounds = array<i64: 128, 128>}, {pipeline_mode = #tpu.pipeline_mode<synchronous>, transform_indices = @transform_6, window_bounds = array<i64: 1, 128>}, {transform_indices = @transform_7, window_bounds = array<i64: 32, 128>}]} {
    %c0 = arith.constant 0 : index
    %c0_0 = arith.constant 0 : index
    %0 = vector.load %arg1[%c0, %c0_0] : memref<32x128xf32, #tpu.memory_space<vmem>>, vector<32x128xf32>
    %c0_1 = arith.constant 0 : index
    %c0_2 = arith.constant 0 : index
    %1 = vector.load %arg2[%c0_1, %c0_2] : memref<128x128xf32, #tpu.memory_space<vmem>>, vector<128x128xf32>
    %cst = arith.constant dense<0.000000e+00> : vector<32x128xf32>
    %2 = tpu.matmul %0, %1, %cst {dimension_numbers = #tpu.dot_dimension_numbers<[1], [0], [0], [1], [0, 0, 1, 1], [], []>} : vector<32x128xf32>, vector<128x128xf32>, vector<32x128xf32> -> vector<32x128xf32>
    %c0_3 = arith.constant 0 : index
    %c0_4 = arith.constant 0 : index
    %3 = vector.load %arg3[%c0_3, %c0_4] : memref<1x128xf32, #tpu.memory_space<vmem>>, vector<1x128xf32>
    %4 = vector.broadcast %3 : vector<1x128xf32> to vector<32x128xf32>
    %5 = arith.addf %2, %4 : vector<32x128xf32>
    %cst_5 = arith.constant 3.000000e+00 : f32
    %6 = vector.broadcast %cst_5 : f32 to vector<32x128xf32>
    %7 = arith.addf %5, %6 : vector<32x128xf32>
    %cst_6 = arith.constant 0.000000e+00 : f32
    %cst_7 = arith.constant 6.000000e+00 : f32
    %8 = vector.broadcast %cst_6 : f32 to vector<32x128xf32>
    %9 = arith.maximumf %8, %7 : vector<32x128xf32>
    %10 = vector.broadcast %cst_7 : f32 to vector<32x128xf32>
    %11 = arith.minimumf %10, %9 : vector<32x128xf32>
    %12 = arith.mulf %5, %11 : vector<32x128xf32>
    %cst_8 = arith.constant 0.166666672 : f32
    %13 = vector.broadcast %cst_8 : f32 to vector<32x128xf32>
    %14 = arith.mulf %12, %13 : vector<32x128xf32>
    %cst_9 = arith.constant dense<0.000000e+00> : vector<32xf32>
    %15 = vector.multi_reduction <add>, %14, %cst_9 [1] : vector<32x128xf32> to vector<32xf32>
    %16 = vector.shape_cast %15 : vector<32xf32> to vector<32x1xf32>
    %cst_10 = arith.constant 1.562500e-02 : f32
    %17 = vector.broadcast %cst_10 : f32 to vector<32x1xf32>
    %18 = arith.mulf %16, %17 : vector<32x1xf32>
    %19 = tpu.iota {dimensions = array<i32: 1>} : vector<32x128xi32>
    %c64_i32 = arith.constant 64 : i32
    %20 = vector.broadcast %c64_i32 : i32 to vector<32x128xi32>
    %21 = arith.cmpi slt, %19, %20 : vector<32x128xi32>
    %22 = vector.broadcast %18 : vector<32x1xf32> to vector<32x128xf32>
    %23 = arith.subf %14, %22 : vector<32x128xf32>
    %cst_11 = arith.constant 0.000000e+00 : f32
    %24 = vector.broadcast %cst_11 : f32 to vector<32x128xf32>
    %25 = arith.select %21, %23, %24 : vector<32x128xi1>, vector<32x128xf32>
    %26 = arith.mulf %25, %25 : vector<32x128xf32>
    %cst_12 = arith.constant dense<0.000000e+00> : vector<32xf32>
    %27 = vector.multi_reduction <add>, %26, %cst_12 [1] : vector<32x128xf32> to vector<32xf32>
    %28 = vector.shape_cast %27 : vector<32xf32> to vector<32x1xf32>
    %cst_13 = arith.constant 1.562500e-02 : f32
    %29 = vector.broadcast %cst_13 : f32 to vector<32x1xf32>
    %30 = arith.mulf %28, %29 : vector<32x1xf32>
    %31 = vector.broadcast %18 : vector<32x1xf32> to vector<32x128xf32>
    %32 = arith.subf %14, %31 : vector<32x128xf32>
    %cst_14 = arith.constant 9.99999974E-6 : f32
    %33 = vector.broadcast %cst_14 : f32 to vector<32x1xf32>
    %34 = arith.addf %30, %33 : vector<32x1xf32>
    %35 = math.rsqrt %34 : vector<32x1xf32>
    %36 = vector.broadcast %35 : vector<32x1xf32> to vector<32x128xf32>
    %37 = arith.mulf %32, %36 : vector<32x128xf32>
    %c0_15 = arith.constant 0 : index
    %c0_16 = arith.constant 0 : index
    %38 = vector.load %arg4[%c0_15, %c0_16] : memref<1x128xf32, #tpu.memory_space<vmem>>, vector<1x128xf32>
    %39 = vector.broadcast %38 : vector<1x128xf32> to vector<32x128xf32>
    %40 = arith.mulf %37, %39 : vector<32x128xf32>
    %c0_17 = arith.constant 0 : index
    %c0_18 = arith.constant 0 : index
    %41 = vector.load %arg5[%c0_17, %c0_18] : memref<1x128xf32, #tpu.memory_space<vmem>>, vector<1x128xf32>
    %42 = vector.broadcast %41 : vector<1x128xf32> to vector<32x128xf32>
    %43 = arith.addf %40, %42 : vector<32x128xf32>
    %c0_19 = arith.constant 0 : index
    %c0_20 = arith.constant 0 : index
    %44 = vector.load %arg6[%c0_19, %c0_20] : memref<128x128xf32, #tpu.memory_space<vmem>>, vector<128x128xf32>
    %cst_21 = arith.constant dense<0.000000e+00> : vector<32x128xf32>
    %45 = tpu.matmul %43, %44, %cst_21 {dimension_numbers = #tpu.dot_dimension_numbers<[1], [0], [0], [1], [0, 0, 1, 1], [], []>} : vector<32x128xf32>, vector<128x128xf32>, vector<32x128xf32> -> vector<32x128xf32>
    %c0_22 = arith.constant 0 : index
    %c0_23 = arith.constant 0 : index
    %46 = vector.load %arg7[%c0_22, %c0_23] : memref<1x128xf32, #tpu.memory_space<vmem>>, vector<1x128xf32>
    %47 = vector.broadcast %46 : vector<1x128xf32> to vector<32x128xf32>
    %48 = arith.addf %45, %47 : vector<32x128xf32>
    %c0_24 = arith.constant 0 : index
    %c0_25 = arith.constant 0 : index
    %49 = vector.load %arg8[%c0_24, %c0_25] : memref<32x128xf32, #tpu.memory_space<vmem>>, vector<32x128xf32>
    tpu.vector_store %arg8[%c0_24, %c0_25], %48 {strides = array<i32>} : memref<32x128xf32, #tpu.memory_space<vmem>>, vector<32x128xf32>,
    return
  }
  func.func @transform_0(%arg0: i32) -> (i32, i32) {
    %c0_i32 = arith.constant 0 : i32
    %c0_i32_0 = arith.constant 0 : i32
    return %arg0, %c0_i32 : i32, i32
  }
  func.func @transform_1(%arg0: i32) -> (i32, i32) {
    %c0_i32 = arith.constant 0 : i32
    %c0_i32_0 = arith.constant 0 : i32
    %c0_i32_1 = arith.constant 0 : i32
    return %c0_i32, %c0_i32_0 : i32, i32
  }
  func.func @transform_2(%arg0: i32) -> (i32, i32) {
    %c0_i32 = arith.constant 0 : i32
    %c0_i32_0 = arith.constant 0 : i32
    %c0_i32_1 = arith.constant 0 : i32
    return %c0_i32, %c0_i32_0 : i32, i32
  }
  func.func @transform_3(%arg0: i32) -> (i32, i32) {
    %c0_i32 = arith.constant 0 : i32
    %c0_i32_0 = arith.constant 0 : i32
    %c0_i32_1 = arith.constant 0 : i32
    return %c0_i32, %c0_i32_0 : i32, i32
  }
  func.func @transform_4(%arg0: i32) -> (i32, i32) {
    %c0_i32 = arith.constant 0 : i32
    %c0_i32_0 = arith.constant 0 : i32
    %c0_i32_1 = arith.constant 0 : i32
    return %c0_i32, %c0_i32_0 : i32, i32
  }
  func.func @transform_5(%arg0: i32) -> (i32, i32) {
    %c0_i32 = arith.constant 0 : i32
    %c0_i32_0 = arith.constant 0 : i32
    %c0_i32_1 = arith.constant 0 : i32
    return %c0_i32, %c0_i32_0 : i32, i32
  }
  func.func @transform_6(%arg0: i32) -> (i32, i32) {
    %c0_i32 = arith.constant 0 : i32
    %c0_i32_0 = arith.constant 0 : i32
    %c0_i32_1 = arith.constant 0 : i32
    return %c0_i32, %c0_i32_0 : i32, i32
  }
  func.func @transform_7(%arg0: i32) -> (i32, i32) {
    %c0_i32 = arith.constant 0 : i32
    %c0_i32_0 = arith.constant 0 : i32
    return %arg0, %c0_i32 : i32, i32
  }
}

</mosaic_0001>

<llo_original>
// kernel: linear_mlp.1
$region0: #{linear_mlp.1}
  #allocation0 [shape = 'u32[]', space=smem, size = 0x4, offset = 0x4, fixed_abs, tag = 'smem constant byte address 0x4 - core index']
  #allocation1 [shape = 'u32[144,128]{1,0:T(1,128)}', space=vmem, size = 0x12000, scoped, tag = 'internal scratch']
  %s0 = inlined_call_operand.vmem [shape: f32[64,128], index: 0, kind: input, shape index: {}]
  %s1 = inlined_call_operand.vmem [shape: f32[128,128], index: 1, kind: input, shape index: {}]
  %s2 = inlined_call_operand.vmem [shape: f32[1,128], index: 2, kind: input, shape index: {}]
  %s3 = inlined_call_operand.vmem [shape: f32[1,128], index: 3, kind: input, shape index: {}]
  %s4 = inlined_call_operand.vmem [shape: f32[1,128], index: 4, kind: input, shape index: {}]
  %s5 = inlined_call_operand.vmem [shape: f32[128,128], index: 5, kind: input, shape index: {}]
  %s6 = inlined_call_operand.vmem [shape: f32[1,128], index: 6, kind: input, shape index: {}]
  %s7 = inlined_call_operand.vmem [shape: f32[64,128], index: 7, kind: output, shape index: {}]
  %s8 = sld [smem:[#allocation0]]
  $region61: #{linear_mlp.1} parent=0
    _
  %s10 = ssub.s32 1, %s8
  %s11 = scalar_select 0, %s10, %s8
  loop: start=0, step=1, limit=4
  $region2: #{linear_mlp.1} parent=0 // loop_pre_header
    _
  $region3: #{linear_mlp.1} parent=0 // loop_header
    %s13 = sphi 0, %s17
    %p14 = scmp.ge.s32.totalorder %s13, 4
    %s23 = sphi 0, %s25
    %s26 = sphi 0, %s23
    %s27 = sphi 0, %s26
    %s43 = sphi 0, %s27
    %s47 = sphi 0, %s47
    %s49 = sphi 0, %s47
    %s50 = sphi 0, %s49
    %s64 = sphi 0, %s50
    %s68 = sphi 0, %s68
    %s70 = sphi 0, %s68
    %s71 = sphi 0, %s70
    %s85 = sphi 0, %s71
    %s89 = sphi 0, %s89
    %s91 = sphi 0, %s89
    %s92 = sphi 0, %s91
    %s106 = sphi 0, %s92
    %s110 = sphi 0, %s110
    %s112 = sphi 0, %s110
    %s113 = sphi 0, %s112
    %s127 = sphi 0, %s113
    %s131 = sphi 0, %s131
    %s133 = sphi 0, %s131
    %s134 = sphi 0, %s133
    %s148 = sphi 0, %s134
    %s152 = sphi 0, %s152
    %s154 = sphi 0, %s152
    %s155 = sphi 0, %s154
    %s169 = sphi 0, %s155
    %s175 = sphi 0, %s177
    %s178 = sphi 0, %s175
    %s179 = sphi 0, %s178
    %s195 = sphi 0, %s179
  $region4: #{linear_mlp.1} parent=0 // loop_header_branch
    %16 = sbr.rel (%p14) target = $region8
  $region5: #{linear_mlp.1} parent=0 // loop_body
    %s18 = ssub.s32 %s13, 1
    %s19 = ssub.s32 %s13, 2
    %s20 = sadd.s32 %s13, 1
    %s21 = ssub.s32 %s13, %s20
    %p22 = scmp.eq.s32.totalorder %s21, 0
    %s24 = sadd.s32 %s23, 1
    %s25 = scalar_select %p22, %s23, %s24
    %p28 = pneg %p22
    %p29 = scmp.eq.s32.totalorder %s13, 1
    %p30 = por %p28, %p29
    %p31 = scmp.ne.s32.totalorder %s23, %s26
    %p32 = scmp.eq.s32.totalorder %s13, 0
    %p33 = por %p31, %p32
    %p34 = scmp.ne.s32.totalorder %s23, %s26
    %p35 = scmp.eq.s32.totalorder %s18, 1
    %p36 = por %p34, %p35
    %p37 = scmp.ne.s32.totalorder %s26, %s27
    %p38 = scmp.eq.s32.totalorder %s18, 0
    %p39 = por %p37, %p38
    %p40 = scmp.ne.s32.totalorder %s26, %s27
    %p41 = scmp.eq.s32.totalorder %s19, 1
    %p42 = por %p40, %p41
    %p44 = scmp.ne.s32.totalorder %s27, %s43
    %p45 = scmp.eq.s32.totalorder %s19, 0
    %p46 = por %p44, %p45
    %s48 = sadd.s32 %s47, 1
    %p51 = scmp.eq.s32.totalorder %s13, 1
    %p52 = scmp.ne.s32.totalorder %s47, %s49
    %p53 = scmp.eq.s32.totalorder %s13, 0
    %p54 = por %p52, %p53
    %p55 = scmp.ne.s32.totalorder %s47, %s49
    %p56 = scmp.eq.s32.totalorder %s18, 1
    %p57 = por %p55, %p56
    %p58 = scmp.ne.s32.totalorder %s49, %s50
    %p59 = scmp.eq.s32.totalorder %s18, 0
    %p60 = por %p58, %p59
    %p61 = scmp.ne.s32.totalorder %s49, %s50
    %p62 = scmp.eq.s32.totalorder %s19, 1
    %p63 = por %p61, %p62
    %p65 = scmp.ne.s32.totalorder %s50, %s64
    %p66 = scmp.eq.s32.totalorder %s19, 0
    %p67 = por %p65, %p66
    %s69 = sadd.s32 %s68, 1
    %p72 = scmp.eq.s32.totalorder %s13, 1
    %p73 = scmp.ne.s32.totalorder %s68, %s70
    %p74 = scmp.eq.s32.totalorder %s13, 0
    %p75 = por %p73, %p74
    %p76 = scmp.ne.s32.totalorder %s68, %s70
    %p77 = scmp.eq.s32.totalorder %s18, 1
    %p78 = por %p76, %p77
    %p79 = scmp.ne.s32.totalorder %s70, %s71
    %p80 = scmp.eq.s32.totalorder %s18, 0
    %p81 = por %p79, %p80
    %p82 = scmp.ne.s32.totalorder %s70, %s71
    %p83 = scmp.eq.s32.totalorder %s19, 1
    %p84 = por %p82, %p83
    %p86 = scmp.ne.s32.totalorder %s71, %s85
    %p87 = scmp.eq.s32.totalorder %s19, 0
    %p88 = por %p86, %p87
    %s90 = sadd.s32 %s89, 1
    %p93 = scmp.eq.s32.totalorder %s13, 1
    %p94 = scmp.ne.s32.totalorder %s89, %s91
    %p95 = scmp.eq.s32.totalorder %s13, 0
    %p96 = por %p94, %p95
    %p97 = scmp.ne.s32.totalorder %s89, %s91
    %p98 = scmp.eq.s32.totalorder %s18, 1
    %p99 = por %p97, %p98
    %p100 = scmp.ne.s32.totalorder %s91, %s92
    %p101 = scmp.eq.s32.totalorder %s18, 0
    %p102 = por %p100, %p101
    %p103 = scmp.ne.s32.totalorder %s91, %s92
    %p104 = scmp.eq.s32.totalorder %s19, 1
    %p105 = por %p103, %p104
    %p107 = scmp.ne.s32.totalorder %s92, %s106
    %p108 = scmp.eq.s32.totalorder %s19, 0
    %p109 = por %p107, %p108
    %s111 = sadd.s32 %s110, 1
    %p114 = scmp.eq.s32.totalorder %s13, 1
    %p115 = scmp.ne.s32.totalorder %s110, %s112
    %p116 = scmp.eq.s32.totalorder %s13, 0
    %p117 = por %p115, %p116
    %p118 = scmp.ne.s32.totalorder %s110, %s112
    %p119 = scmp.eq.s32.totalorder %s18, 1
    %p120 = por %p118, %p119
    %p121 = scmp.ne.s32.totalorder %s112, %s113
    %p122 = scmp.eq.s32.totalorder %s18, 0
    %p123 = por %p121, %p122
    %p124 = scmp.ne.s32.totalorder %s112, %s113
    %p125 = scmp.eq.s32.totalorder %s19, 1
    %p126 = por %p124, %p125
    %p128 = scmp.ne.s32.totalorder %s113, %s127
    %p129 = scmp.eq.s32.totalorder %s19, 0
    %p130 = por %p128, %p129
    %s132 = sadd.s32 %s131, 1
    %p135 = scmp.eq.s32.totalorder %s13, 1
    %p136 = scmp.ne.s32.totalorder %s131, %s133
    %p137 = scmp.eq.s32.totalorder %s13, 0
    %p138 = por %p136, %p137
    %p139 = scmp.ne.s32.totalorder %s131, %s133
    %p140 = scmp.eq.s32.totalorder %s18, 1
    %p141 = por %p139, %p140
    %p142 = scmp.ne.s32.totalorder %s133, %s134
    %p143 = scmp.eq.s32.totalorder %s18, 0
    %p144 = por %p142, %p143
    %p145 = scmp.ne.s32.totalorder %s133, %s134
    %p146 = scmp.eq.s32.totalorder %s19, 1
    %p147 = por %p145, %p146
    %p149 = scmp.ne.s32.totalorder %s134, %s148
    %p150 = scmp.eq.s32.totalorder %s19, 0
    %p151 = por %p149, %p150
    %s153 = sadd.s32 %s152, 1
    %p156 = scmp.eq.s32.totalorder %s13, 1
    %p157 = scmp.ne.s32.totalorder %s152, %s154
    %p158 = scmp.eq.s32.totalorder %s13, 0
    %p159 = por %p157, %p158
    %p160 = scmp.ne.s32.totalorder %s152, %s154
    %p161 = scmp.eq.s32.totalorder %s18, 1
    %p162 = por %p160, %p161
    %p163 = scmp.ne.s32.totalorder %s154, %s155
    %p164 = scmp.eq.s32.totalorder %s18, 0
    %p165 = por %p163, %p164
    %p166 = scmp.ne.s32.totalorder %s154, %s155
    %p167 = scmp.eq.s32.totalorder %s19, 1
    %p168 = por %p166, %p167
    %p170 = scmp.ne.s32.totalorder %s155, %s169
    %p171 = scmp.eq.s32.totalorder %s19, 0
    %p172 = por %p170, %p171
    %s173 = ssub.s32 %s13, %s20
    %p174 = scmp.eq.s32.totalorder %s173, 0
    %s176 = sadd.s32 %s175, 1
    %s177 = scalar_select %p174, %s175, %s176
    %p180 = pneg %p174
    %p181 = scmp.eq.s32.totalorder %s13, 1
    %p182 = por %p180, %p181
    %p183 = scmp.ne.s32.totalorder %s175, %s178
    %p184 = scmp.eq.s32.totalorder %s13, 0
    %p185 = por %p183, %p184
    %p186 = scmp.ne.s32.totalorder %s175, %s178
    %p187 = scmp.eq.s32.totalorder %s18, 1
    %p188 = por %p186, %p187
    %p189 = scmp.ne.s32.totalorder %s178, %s179
    %p190 = scmp.eq.s32.totalorder %s18, 0
    %p191 = por %p189, %p190
    %p192 = scmp.ne.s32.totalorder %s178, %s179
    %p193 = scmp.eq.s32.totalorder %s19, 1
    %p194 = por %p192, %p193
    %p196 = scmp.ne.s32.totalorder %s179, %s195
    %p197 = scmp.eq.s32.totalorder %s19, 0
    %p198 = por %p196, %p197
    %p199 = scmp.le.s32.totalorder 1, %s13
    %p200 = scmp.lt.s32.totalorder %s13, 3
    %p201 = pnand %p199, %p200
    %p202 = pneg %p201
    // Predicated region
    $region9: #{linear_mlp.1} parent=5 // pred_check
      _
    $region10: #{linear_mlp.1} parent=5 // pred_check_branch
      %204 = sbr.rel (%p201) target = $region12
    $region11: #{linear_mlp.1} parent=5 // pred_region
      %s205 = ssub.s32 %s13, 1
      // Predicated region
      $region13: #{linear_mlp.1} parent=11 // pred_check
        %p206 = pneg %p60
      $region14: #{linear_mlp.1} parent=11 // pred_check_branch
        %208 = sbr.rel (%p206) target = $region16
      $region15: #{linear_mlp.1} parent=11 // pred_region
        _
      $region16: #{linear_mlp.1} parent=11 // pred_fallthru
        _
      // Predicated region
      $region17: #{linear_mlp.1} parent=11 // pred_check
        %p209 = pneg %p81
      $region18: #{linear_mlp.1} parent=11 // pred_check_branch
        %211 = sbr.rel (%p209) target = $region20
      $region19: #{linear_mlp.1} parent=11 // pred_region
        _
      $region20: #{linear_mlp.1} parent=11 // pred_fallthru
        _
      // Predicated region
      $region21: #{linear_mlp.1} parent=11 // pred_check
        %p212 = pneg %p102
      $region22: #{linear_mlp.1} parent=11 // pred_check_branch
        %214 = sbr.rel (%p212) target = $region24
      $region23: #{linear_mlp.1} parent=11 // pred_region
        _
      $region24: #{linear_mlp.1} parent=11 // pred_fallthru
        _
      // Predicated region
      $region25: #{linear_mlp.1} parent=11 // pred_check
        %p215 = pneg %p123
      $region26: #{linear_mlp.1} parent=11 // pred_check_branch
        %217 = sbr.rel (%p215) target = $region28
      $region27: #{linear_mlp.1} parent=11 // pred_region
        _
      $region28: #{linear_mlp.1} parent=11 // pred_fallthru
        _
      // Predicated region
      $region29: #{linear_mlp.1} parent=11 // pred_check
        %p218 = pneg %p144
      $region30: #{linear_mlp.1} parent=11 // pred_check_branch
        %220 = sbr.rel (%p218) target = $region32
      $region31: #{linear_mlp.1} parent=11 // pred_region
        _
      $region32: #{linear_mlp.1} parent=11 // pred_fallthru
        _
      // Predicated region
      $region33: #{linear_mlp.1} parent=11 // pred_check
        %p221 = pneg %p165
      $region34: #{linear_mlp.1} parent=11 // pred_check_branch
        %223 = sbr.rel (%p221) target = $region36
      $region35: #{linear_mlp.1} parent=11 // pred_region
        _
      $region36: #{linear_mlp.1} parent=11 // pred_fallthru
        _
    $region12: #{linear_mlp.1} parent=5 // pred_fallthru
      _
    %p224 = scmp.lt.s32.totalorder %s13, 2
    // Predicated region
    $region37: #{linear_mlp.1} parent=5 // pred_check
      %p225 = pneg %p224
    $region38: #{linear_mlp.1} parent=5 // pred_check_branch
      %227 = sbr.rel (%p225) target = $region40
    $region39: #{linear_mlp.1} parent=5 // pred_region
      // Predicated region
      $region41: #{linear_mlp.1} parent=39 // pred_check
        %p228 = pneg %p33
      $region42: #{linear_mlp.1} parent=39 // pred_check_branch
        %230 = sbr.rel (%p228) target = $region44
      $region43: #{linear_mlp.1} parent=39 // pred_region
        %s231 = smul.u32 4, %s13
        %p232 = scmp.lt.s32.totalorder %s231, 7
        %s233 = scalar_select %p232, %s231, 7
        %s234 = smul.addr %s233, 8
        %s235 = scalar_lea.vmem %s0, %s234
        %s236 = smul.u32 4, %s13
      $region44: #{linear_mlp.1} parent=39 // pred_fallthru
        _
    $region40: #{linear_mlp.1} parent=5 // pred_fallthru
      _
    %p237 = scmp.le.s32.totalorder 1, %s13
    %p238 = scmp.lt.s32.totalorder %s13, 3
    %p239 = pnand %p237, %p238
    %p240 = pneg %p239
    // Predicated region
    $region45: #{linear_mlp.1} parent=5 // pred_check
      _
    $region46: #{linear_mlp.1} parent=5 // pred_check_branch
      %242 = sbr.rel (%p239) target = $region48
    $region47: #{linear_mlp.1} parent=5 // pred_region
      %s243 = ssub.s32 %s13, 1
      %s244 = smul.u32 4, %s18
      %p245 = scmp.lt.s32.totalorder %s244, 7
      %s246 = scalar_select %p245, %s244, 7
      %s247 = smul.addr %s246, 8
      %s248 = scalar_lea.vmem %s0, %s247
      %p249 = pneg %p39
      %p250 = pneg %p36
      %p251 = pneg %p60
      %p252 = pneg %p57
      %p253 = pneg %p81
      %p254 = pneg %p78
      %p255 = pneg %p102
      %p256 = pneg %p99
      %p257 = pneg %p123
      %p258 = pneg %p120
      %p259 = pneg %p144
      %p260 = pneg %p141
      %p261 = pneg %p165
      %p262 = pneg %p162
      %p263 = pneg %p191
      %p264 = pneg %p188
      %s265 = smul.u32 4, %s18
      %p266 = scmp.lt.s32.totalorder %s265, 7
      %s267 = scalar_select %p266, %s265, 7
      %s268 = smul.addr %s267, 8
      %s269 = scalar_lea.vmem %s7, %s268
      %s270 = smul.u32 4, %s18
      %p271 = scmp.lt.s32.totalorder %s270, 7
      %s272 = scalar_select %p271, %s270, 7
      %s273 = smul.addr %s272, 8
      %s274 = scalar_lea.vmem %s0, %s273
      %s275 = smul.u32 4, %s18
      %s276 = smul.u32 4, %s18
      %p277 = scmp.lt.s32.totalorder %s276, 7
      %s278 = scalar_select %p277, %s276, 7
      %s279 = smul.addr %s278, 8
      %s280 = scalar_lea.vmem %s7, %s279
      %s281 = smul.u32 4, %s18
      %v282 = vld [vmem:[%s274] sm:$0xff]
      %v283 = vld [vmem:[%s274 + $0x8] sm:$0xff]
      %v284 = vld [vmem:[%s274 + $0x10] sm:$0xff]
      %v285 = vld [vmem:[%s274 + $0x18] sm:$0xff]
      %v286 = vld [vmem:[%s1] sm:$0xff]
      %v287 = vld [vmem:[%s1 + $0x8] sm:$0xff]
      %v288 = vld [vmem:[%s1 + $0x10] sm:$0xff]
      %v289 = vld [vmem:[%s1 + $0x18] sm:$0xff]
      %v290 = vld [vmem:[%s1 + $0x20] sm:$0xff]
      %v291 = vld [vmem:[%s1 + $0x28] sm:$0xff]
      %v292 = vld [vmem:[%s1 + $0x30] sm:$0xff]
      %v293 = vld [vmem:[%s1 + $0x38] sm:$0xff]
      %v294 = vld [vmem:[%s1 + $0x40] sm:$0xff]
      %v295 = vld [vmem:[%s1 + $0x48] sm:$0xff]
      %v296 = vld [vmem:[%s1 + $0x50] sm:$0xff]
      %v297 = vld [vmem:[%s1 + $0x58] sm:$0xff]
      %v298 = vld [vmem:[%s1 + $0x60] sm:$0xff]
      %v299 = vld [vmem:[%s1 + $0x68] sm:$0xff]
      %v300 = vld [vmem:[%s1 + $0x70] sm:$0xff]
      %v301 = vld [vmem:[%s1 + $0x78] sm:$0xff]
      %v302 = vld [vmem:[%s2] sm:$0x1]
      %v304 = vlaneseq
      %v305 = vshrl.u32 %v304, 7
      %v306 = vsub.s32 0, %v305
      %v307 = vrot.slane %v302, %v306
      %309 = vmatprep.subr.mxu0 0.0
      %310 = vmatpush1.msra.mxu0 %v286
      %311 = vmatprep.subr.mxu0 0.0
      %312 = vmatpush1.msra.mxu0 %v287
      %313 = vmatprep.subr.mxu0 0.0
      %314 = vmatpush1.msra.mxu0 %v288
      %315 = vmatprep.subr.mxu0 0.0
      %316 = vmatpush1.msra.mxu0 %v289
      %317 = vmatprep.subr.mxu0 0.0
      %318 = vmatpush1.msra.mxu0 %v290
      %319 = vmatprep.subr.mxu0 0.0
      %320 = vmatpush1.msra.mxu0 %v291
      %321 = vmatprep.subr.mxu0 0.0
      %322 = vmatpush1.msra.mxu0 %v292
      %323 = vmatprep.subr.mxu0 0.0
      %324 = vmatpush1.msra.mxu0 %v293
      %325 = vmatprep.subr.mxu0 0.0
      %326 = vmatpush1.msra.mxu0 %v294
      %327 = vmatprep.subr.mxu0 0.0
      %328 = vmatpush1.msra.mxu0 %v295
      %329 = vmatprep.subr.mxu0 0.0
      %330 = vmatpush1.msra.mxu0 %v296
      %331 = vmatprep.subr.mxu0 0.0
      %332 = vmatpush1.msra.mxu0 %v297
      %333 = vmatprep.subr.mxu0 0.0
      %334 = vmatpush1.msra.mxu0 %v298
      %335 = vmatprep.subr.mxu0 0.0
      %336 = vmatpush1.msra.mxu0 %v299
      %337 = vmatprep.subr.mxu0 0.0
      %338 = vmatpush1.msra.mxu0 %v300
      %339 = vmatprep.subr.mxu0 0.0
      %340 = vmatpush1.msra.mxu0 %v301
      %341 = vmatprep.subr.mxu0 0.0
      %342 = vmatpush1.msra.mxu0 0.0
      %343 = vmatprep.subr.mxu0 0.0
      %344 = vmatpush1.msra.mxu0 0.0
      %345 = vmatprep.subr.mxu0 0.0
      %346 = vmatpush1.msra.mxu0 0.0
      %347 = vmatprep.subr.mxu0 0.0
      %348 = vmatpush1.msra.mxu0 0.0
      %349 = vmatprep.subr.mxu0 0.0
      %350 = vmatpush1.msra.mxu0 0.0
      %351 = vmatprep.subr.mxu0 0.0
      %352 = vmatpush1.msra.mxu0 0.0
      %353 = vmatprep.subr.mxu0 0.0
      %354 = vmatpush1.msra.mxu0 0.0
      %355 = vmatprep.subr.mxu0 0.0
      %356 = vmatpush1.msra.mxu0 0.0
      %357 = vmatprep.subr.mxu0 0.0
      %358 = vmatpush1.msra.mxu0 0.0
      %359 = vmatprep.subr.mxu0 0.0
      %360 = vmatpush1.msra.mxu0 0.0
      %361 = vmatprep.subr.mxu0 0.0
      %362 = vmatpush1.msra.mxu0 0.0
      %363 = vmatprep.subr.mxu0 0.0
      %364 = vmatpush1.msra.mxu0 0.0
      %365 = vmatprep.subr.mxu0 0.0
      %366 = vmatpush1.msra.mxu0 0.0
      %367 = vmatprep.subr.mxu0 0.0
      %368 = vmatpush1.msra.mxu0 0.0
      %369 = vmatprep.subr.mxu0 0.0
      %370 = vmatpush1.msra.mxu0 0.0
      %371 = vmatprep.subr.mxu0 0.0
      %372 = vmatpush1.msra.mxu0 0.0
      %373 = vmatprep.mubr.f32.mxu0 0.0
      %374 = vmatmul.mubr.f32.gmra.mrb[0].mxu0 %v282
      %v375 = vpop.f32.mrb[0].mxu0
      %v376 = vadd.f32 %v307, %v375
      %v377 = vpop.f32.mrb[0].mxu0
      %378 = vmatprep.mubr.f32.mxu0 0.0
      %379 = vmatmul.mubr.f32.gmra.mrb[0].mxu0 %v283
      %v380 = vpop.f32.mrb[0].mxu0
      %v381 = vadd.f32 %v307, %v380
      %v382 = vpop.f32.mrb[0].mxu0
      %383 = vmatprep.mubr.f32.mxu0 0.0
      %384 = vmatmul.mubr.f32.gmra.mrb[0].mxu0 %v284
      %v385 = vpop.f32.mrb[0].mxu0
      %v386 = vadd.f32 %v307, %v385
      %v387 = vpop.f32.mrb[0].mxu0
      %388 = vmatprep.mubr.f32.mxu0 0.0
      %389 = vmatmul.mubr.f32.gmra.mrb[0].mxu0 %v285
      %v390 = vpop.f32.mrb[0].mxu0
      %v391 = vadd.f32 %v307, %v390
      %v392 = vpop.f32.mrb[0].mxu0
      %393 = vdwg.mxu0
      %v394 = vadd.f32 %v376, 3.0
      %v395 = vadd.f32 %v381, 3.0
      %v396 = vadd.f32 %v386, 3.0
      %v397 = vadd.f32 %v391, 3.0
      %v398 = vmax.f32 %v394, 0.0
      %v399 = vmax.f32 %v395, 0.0
      %v400 = vmax.f32 %v396, 0.0
      %v401 = vmax.f32 %v397, 0.0
      %v402 = vmin.f32 %v398, 6.0
      %v403 = vmin.f32 %v399, 6.0
      %v404 = vmin.f32 %v400, 6.0
      %v405 = vmin.f32 %v401, 6.0
      %v406 = vmul.f32 %v376, %v402
      %v407 = vmul.f32 %v381, %v403
      %v408 = vmul.f32 %v386, %v404
      %v409 = vmul.f32 %v391, %v405
      %v410 = vmul.f32 %v406, 0.16666667
      %v411 = vmul.f32 %v407, 0.16666667
      %v412 = vmul.f32 %v408, 0.16666667
      %v413 = vmul.f32 %v409, 0.16666667
      %414 = vadd.xlane.f32.xlu0 %v410
      %v415 = vpop.xlane.xlu0 %414
      %416 = vadd.xlane.f32.xlu0 %v411
      %v417 = vpop.xlane.xlu0 %416
      %418 = vadd.xlane.f32.xlu0 %v412
      %v419 = vpop.xlane.xlu0 %418
      %420 = vadd.xlane.f32.xlu0 %v413
      %v421 = vpop.xlane.xlu0 %420
      %v422 = vmul.f32 %v415, 0.015625
      %v423 = vmul.f32 %v417, 0.015625
      %v424 = vmul.f32 %v419, 0.015625
      %v425 = vmul.f32 %v421, 0.015625
      %v426 = vlaneseq
      %v427 = vand.u32 %v426, 127
      %vm428 = vcmp.lt.s32.totalorder %v427, 64
      %v429 = vsub.f32 %v410, %v422
      %v430 = vsub.f32 %v411, %v423
      %v431 = vsub.f32 %v412, %v424
      %v432 = vsub.f32 %v413, %v425
      %v433 = vsel %vm428, %v429, 0.0
      %v434 = vsel %vm428, %v430, 0.0
      %v435 = vsel %vm428, %v431, 0.0
      %v436 = vsel %vm428, %v432, 0.0
      %v437 = vmul.f32 %v433, %v433
      %v438 = vmul.f32 %v434, %v434
      %v439 = vmul.f32 %v435, %v435
      %v440 = vmul.f32 %v436, %v436
      %441 = vadd.xlane.f32.xlu0 %v437
      %v442 = vpop.xlane.xlu0 %441
      %443 = vadd.xlane.f32.xlu0 %v438
      %v444 = vpop.xlane.xlu0 %443
      %445 = vadd.xlane.f32.xlu0 %v439
      %v446 = vpop.xlane.xlu0 %445
      %447 = vadd.xlane.f32.xlu0 %v440
      %v448 = vpop.xlane.xlu0 %447
      %v449 = vmul.f32 %v442, 0.015625
      %v450 = vmul.f32 %v444, 0.015625
      %v451 = vmul.f32 %v446, 0.015625
      %v452 = vmul.f32 %v448, 0.015625
      %v453 = vadd.f32 %v449, 1e-05
      %v454 = vadd.f32 %v450, 1e-05
      %v455 = vadd.f32 %v451, 1e-05
      %v456 = vadd.f32 %v452, 1e-05
      %v457 = vrsqrt.pop %v453
      %v458 = vrsqrt.pop %v454
      %v459 = vrsqrt.pop %v455
      %v460 = vrsqrt.pop %v456
      %v461 = vmul.f32 %v429, %v457
      %v462 = vmul.f32 %v430, %v458
      %v463 = vmul.f32 %v431, %v459
      %v464 = vmul.f32 %v432, %v460
      %v465 = vld [vmem:[%s3] sm:$0x1]
      %v467 = vlaneseq
      %v468 = vshrl.u32 %v467, 7
      %v469 = vsub.s32 0, %v468
      %v470 = vrot.slane %v465, %v469
      %v472 = vmul.f32 %v461, %v470
      %v473 = vmul.f32 %v462, %v470
      %v474 = vmul.f32 %v463, %v470
      %v475 = vmul.f32 %v464, %v470
      %v476 = vld [vmem:[%s4] sm:$0x1]
      %v478 = vlaneseq
      %v479 = vshrl.u32 %v478, 7
      %v480 = vsub.s32 0, %v479
      %v481 = vrot.slane %v476, %v480
      %v483 = vadd.f32 %v472, %v481
      %v484 = vadd.f32 %v473, %v481
      %v485 = vadd.f32 %v474, %v481
      %v486 = vadd.f32 %v475, %v481
      %v487 = vld [vmem:[%s5] sm:$0xff]
      %v488 = vld [vmem:[%s5 + $0x8] sm:$0xff]
      %v489 = vld [vmem:[%s5 + $0x10] sm:$0xff]
      %v490 = vld [vmem:[%s5 + $0x18] sm:$0xff]
      %v491 = vld [vmem:[%s5 + $0x20] sm:$0xff]
      %v492 = vld [vmem:[%s5 + $0x28] sm:$0xff]
      %v493 = vld [vmem:[%s5 + $0x30] sm:$0xff]
      %v494 = vld [vmem:[%s5 + $0x38] sm:$0xff]
      %v495 = vld [vmem:[%s5 + $0x40] sm:$0xff]
      %v496 = vld [vmem:[%s5 + $0x48] sm:$0xff]
      %v497 = vld [vmem:[%s5 + $0x50] sm:$0xff]
      %v498 = vld [vmem:[%s5 + $0x58] sm:$0xff]
      %v499 = vld [vmem:[%s5 + $0x60] sm:$0xff]
      %v500 = vld [vmem:[%s5 + $0x68] sm:$0xff]
      %v501 = vld [vmem:[%s5 + $0x70] sm:$0xff]
      %v502 = vld [vmem:[%s5 + $0x78] sm:$0xff]
      %v503 = vld [vmem:[%s6] sm:$0x1]
      %v505 = vlaneseq
      %v506 = vshrl.u32 %v505, 7
      %v507 = vsub.s32 0, %v506
      %v508 = vrot.slane %v503, %v507
      %510 = vmatprep.subr.mxu0 0.0
      %511 = vmatpush1.msra.mxu0 %v487
      %512 = vmatprep.subr.mxu0 0.0
      %513 = vmatpush1.msra.mxu0 %v488
      %514 = vmatprep.subr.mxu0 0.0
      %515 = vmatpush1.msra.mxu0 %v489
      %516 = vmatprep.subr.mxu0 0.0
      %517 = vmatpush1.msra.mxu0 %v490
      %518 = vmatprep.subr.mxu0 0.0
      %519 = vmatpush1.msra.mxu0 %v491
      %520 = vmatprep.subr.mxu0 0.0
      %521 = vmatpush1.msra.mxu0 %v492
      %522 = vmatprep.subr.mxu0 0.0
      %523 = vmatpush1.msra.mxu0 %v493
      %524 = vmatprep.subr.mxu0 0.0
      %525 = vmatpush1.msra.mxu0 %v494
      %526 = vmatprep.subr.mxu0 0.0
      %527 = vmatpush1.msra.mxu0 %v495
      %528 = vmatprep.subr.mxu0 0.0
      %529 = vmatpush1.msra.mxu0 %v496
      %530 = vmatprep.subr.mxu0 0.0
      %531 = vmatpush1.msra.mxu0 %v497
      %532 = vmatprep.subr.mxu0 0.0
      %533 = vmatpush1.msra.mxu0 %v498
      %534 = vmatprep.subr.mxu0 0.0
      %535 = vmatpush1.msra.mxu0 %v499
      %536 = vmatprep.subr.mxu0 0.0
      %537 = vmatpush1.msra.mxu0 %v500
      %538 = vmatprep.subr.mxu0 0.0
      %539 = vmatpush1.msra.mxu0 %v501
      %540 = vmatprep.subr.mxu0 0.0
      %541 = vmatpush1.msra.mxu0 %v502
      %542 = vmatprep.subr.mxu0 0.0
      %543 = vmatpush1.msra.mxu0 0.0
      %544 = vmatprep.subr.mxu0 0.0
      %545 = vmatpush1.msra.mxu0 0.0
      %546 = vmatprep.subr.mxu0 0.0
      %547 = vmatpush1.msra.mxu0 0.0
      %548 = vmatprep.subr.mxu0 0.0
      %549 = vmatpush1.msra.mxu0 0.0
      %550 = vmatprep.subr.mxu0 0.0
      %551 = vmatpush1.msra.mxu0 0.0
      %552 = vmatprep.subr.mxu0 0.0
      %553 = vmatpush1.msra.mxu0 0.0
      %554 = vmatprep.subr.mxu0 0.0
      %555 = vmatpush1.msra.mxu0 0.0
      %556 = vmatprep.subr.mxu0 0.0
      %557 = vmatpush1.msra.mxu0 0.0
      %558 = vmatprep.subr.mxu0 0.0
      %559 = vmatpush1.msra.mxu0 0.0
      %560 = vmatprep.subr.mxu0 0.0
      %561 = vmatpush1.msra.mxu0 0.0
      %562 = vmatprep.subr.mxu0 0.0
      %563 = vmatpush1.msra.mxu0 0.0
      %564 = vmatprep.subr.mxu0 0.0
      %565 = vmatpush1.msra.mxu0 0.0
      %566 = vmatprep.subr.mxu0 0.0
      %567 = vmatpush1.msra.mxu0 0.0
      %568 = vmatprep.subr.mxu0 0.0
      %569 = vmatpush1.msra.mxu0 0.0
      %570 = vmatprep.subr.mxu0 0.0
      %571 = vmatpush1.msra.mxu0 0.0
      %572 = vmatprep.subr.mxu0 0.0
      %573 = vmatpush1.msra.mxu0 0.0
      %574 = vmatprep.mubr.f32.mxu0 0.0
      %575 = vmatmul.mubr.f32.gmra.mrb[0].mxu0 %v483
      %v576 = vpop.f32.mrb[0].mxu0
      %v577 = vadd.f32 %v508, %v576
      %v578 = vpop.f32.mrb[0].mxu0
      %579 = vmatprep.mubr.f32.mxu0 0.0
      %580 = vmatmul.mubr.f32.gmra.mrb[0].mxu0 %v484
      %v581 = vpop.f32.mrb[0].mxu0
      %v582 = vadd.f32 %v508, %v581
      %v583 = vpop.f32.mrb[0].mxu0
      %584 = vmatprep.mubr.f32.mxu0 0.0
      %585 = vmatmul.mubr.f32.gmra.mrb[0].mxu0 %v485
      %v586 = vpop.f32.mrb[0].mxu0
      %v587 = vadd.f32 %v508, %v586
      %v588 = vpop.f32.mrb[0].mxu0
      %589 = vmatprep.mubr.f32.mxu0 0.0
      %590 = vmatmul.mubr.f32.gmra.mrb[0].mxu0 %v486
      %v591 = vpop.f32.mrb[0].mxu0
      %v592 = vadd.f32 %v508, %v591
      %v593 = vpop.f32.mrb[0].mxu0
      %594 = vdwg.mxu0
      %595 = vst [vmem:[%s280] sm:$0xff] %v577
      %596 = vst [vmem:[%s280 + $0x8] sm:$0xff] %v582
      %597 = vst [vmem:[%s280 + $0x10] sm:$0xff] %v587
      %598 = vst [vmem:[%s280 + $0x18] sm:$0xff] %v592
      %s599 = smul.u32 4, %s18
      %p600 = scmp.lt.s32.totalorder %s599, 7
      %s601 = scalar_select %p600, %s599, 7
      %s602 = smul.addr %s601, 8
      %s603 = scalar_lea.vmem %s7, %s602
      // Predicated region
      $region49: #{linear_mlp.1} parent=47 // pred_check
        %p604 = pneg %p188
      $region50: #{linear_mlp.1} parent=47 // pred_check_branch
        %606 = sbr.rel (%p604) target = $region52
      $region51: #{linear_mlp.1} parent=47 // pred_region
        %s607 = smul.u32 4, %s18
      $region52: #{linear_mlp.1} parent=47 // pred_fallthru
        _
    $region48: #{linear_mlp.1} parent=5 // pred_fallthru
      _
    %p608 = scmp.le.s32.totalorder 2, %s13
    // Predicated region
    $region53: #{linear_mlp.1} parent=5 // pred_check
      %p609 = pneg %p608
    $region54: #{linear_mlp.1} parent=5 // pred_check_branch
      %611 = sbr.rel (%p609) target = $region56
    $region55: #{linear_mlp.1} parent=5 // pred_region
      %s612 = ssub.s32 %s13, 2
      // Predicated region
      $region57: #{linear_mlp.1} parent=55 // pred_check
        %p613 = pneg %p194
      $region58: #{linear_mlp.1} parent=55 // pred_check_branch
        %615 = sbr.rel (%p613) target = $region60
      $region59: #{linear_mlp.1} parent=55 // pred_region
        %s616 = smul.u32 4, %s19
        %p617 = scmp.lt.s32.totalorder %s616, 7
        %s618 = scalar_select %p617, %s616, 7
        %s619 = smul.addr %s618, 8
        %s620 = scalar_lea.vmem %s7, %s619
      $region60: #{linear_mlp.1} parent=55 // pred_fallthru
        _
    $region56: #{linear_mlp.1} parent=5 // pred_fallthru
      _
  $region6: #{linear_mlp.1} parent=0 // loop_footer
    %s17 = sadd.s32 1, %s13
  $region7: #{linear_mlp.1} parent=0 // loop_footer_branch
    %12 = sbr.rel target = $region3
  $region8: #{linear_mlp.1} parent=0 // loop_exit
    _

</llo_original>
